<compile_context>
chip_gen: v7x
topology: tpu7x:2x2x1
jax: 0.10.0
libtpu: 0.0.40
codegen_flags: <defaults>
</compile_context>

<pallas_src>
import functools

import jax
import jax.numpy as jnp
from jax.experimental import pallas as pl
from jax.experimental.pallas import tpu as pltpu

_LANE = 128
_RED_ROWS = 512                    # row tile for scalar reductions
_TM = 256                          # M tile for conv matmuls (v5e/v6e/v7x safe)
_TK = 512                          # K tile for conv matmuls
_VMEM_LIMIT = 48 * 1024 * 1024     # < v7x's 64 MiB physical VMEM, ample headroom
_BN_EPS = 1e-5
_LRELU_SLOPE = 0.2


def _round_up(x, m):
    return ((x + m - 1) // m) * m


# ----------------------------------------------------------------------------
# Fused conv (im2col matmul) kernels
# ----------------------------------------------------------------------------
@functools.cache
def _make_conv_act_kernel(use_act: bool):
    """matmul + bias (+ LeakyReLU).  grid = (M tiles, K tiles), K innermost."""

    def kernel(p_ref, w_ref, b_ref, y_ref, acc_ref):
        k = pl.program_id(1)

        @pl.when(k == 0)
        def _():
            acc_ref[...] = jnp.zeros_like(acc_ref)

        acc_ref[...] += jnp.dot(p_ref[...], w_ref[...],
                                preferred_element_type=jnp.float32)

        @pl.when(k == pl.num_programs(1) - 1)
        def _():
            y = acc_ref[...] + b_ref[...]
            if use_act:
                y = jnp.where(y >= 0.0, y, _LRELU_SLOPE * y)
            y_ref[...] = y.astype(y_ref.dtype)

    return kernel


@functools.cache
def _make_conv_bn_stats_kernel(m_true: int, tm: int):
    """matmul + bias; also accumulates per-channel sum / sum-of-squares over the
    *whole* M axis (masking padded rows >= m_true) so training-mode BatchNorm
    statistics remain exact under M tiling."""

    def kernel(p_ref, w_ref, b_ref, y_ref, sum_ref, sq_ref,
               acc_ref, s_acc, q_acc):
        i = pl.program_id(0)
        k = pl.program_id(1)
        ni = pl.num_programs(0)
        nk = pl.num_programs(1)

        @pl.when(jnp.logical_and(i == 0, k == 0))
        def _():
            s_acc[...] = jnp.zeros_like(s_acc)
            q_acc[...] = jnp.zeros_like(q_acc)

        @pl.when(k == 0)
        def _():
            acc_ref[...] = jnp.zeros_like(acc_ref)

        acc_ref[...] += jnp.dot(p_ref[...], w_ref[...],
                                preferred_element_type=jnp.float32)

        @pl.when(k == nk - 1)
        def _():
            y = acc_ref[...] + b_ref[...]
            y_ref[...] = y.astype(y_ref.dtype)
            row = i * tm + jax.lax.broadcasted_iota(jnp.int32, y.shape, 0)
            ym = jnp.where(row < m_true, y, 0.0)
            s_acc[...] += jnp.sum(ym, axis=0, keepdims=True)
            q_acc[...] += jnp.sum(ym * y, axis=0, keepdims=True)

        @pl.when(jnp.logical_and(i == ni - 1, k == nk - 1))
        def _():
            sum_ref[...] = s_acc[...]
            sq_ref[...] = q_acc[...]

    return kernel


def _bn_act_apply_kernel(y_ref, scale_ref, shift_ref, o_ref):
    y = y_ref[...].astype(jnp.float32) * scale_ref[...] + shift_ref[...]
    o_ref[...] = jnp.where(y >= 0.0, y, _LRELU_SLOPE * y).astype(o_ref.dtype)


def _conv_act(patches, w, b, *, tm, tk, use_act, out_dtype):
    mp, kp = patches.shape
    coutp = w.shape[1]
    return pl.pallas_call(
        _make_conv_act_kernel(use_act),
        out_shape=jax.ShapeDtypeStruct((mp, coutp), out_dtype),
        grid=(mp // tm, kp // tk),
        in_specs=[pl.BlockSpec((tm, tk), lambda i, k: (i, k)),
                  pl.BlockSpec((tk, coutp), lambda i, k: (k, 0)),
                  pl.BlockSpec((1, coutp), lambda i, k: (0, 0))],
        out_specs=pl.BlockSpec((tm, coutp), lambda i, k: (i, 0)),
        scratch_shapes=[pltpu.VMEM((tm, coutp), jnp.float32)],
        compiler_params=pltpu.CompilerParams(
            dimension_semantics=("parallel", "arbitrary"),
            vmem_limit_bytes=_VMEM_LIMIT),
    )(patches, w, b)


def _conv_bn_stats(patches, w, b, *, m_true, tm, tk):
    mp, kp = patches.shape
    coutp = w.shape[1]
    return pl.pallas_call(
        _make_conv_bn_stats_kernel(m_true, tm),
        out_shape=(jax.ShapeDtypeStruct((mp, coutp), jnp.bfloat16),
                   jax.ShapeDtypeStruct((1, coutp), jnp.float32),
                   jax.ShapeDtypeStruct((1, coutp), jnp.float32)),
        grid=(mp // tm, kp // tk),
        in_specs=[pl.BlockSpec((tm, tk), lambda i, k: (i, k)),
                  pl.BlockSpec((tk, coutp), lambda i, k: (k, 0)),
                  pl.BlockSpec((1, coutp), lambda i, k: (0, 0))],
        out_specs=(pl.BlockSpec((tm, coutp), lambda i, k: (i, 0)),
                   pl.BlockSpec((1, coutp), lambda i, k: (0, 0)),
                   pl.BlockSpec((1, coutp), lambda i, k: (0, 0))),
        scratch_shapes=[pltpu.VMEM((tm, coutp), jnp.float32),
                        pltpu.VMEM((1, coutp), jnp.float32),
                        pltpu.VMEM((1, coutp), jnp.float32)],
        compiler_params=pltpu.CompilerParams(
            # BN stats accumulate across M tiles -> both axes must be sequential.
            dimension_semantics=("arbitrary", "arbitrary"),
            vmem_limit_bytes=_VMEM_LIMIT),
    )(patches, w, b)


def _bn_act_apply(y, scale, shift, *, tm):
    mp, coutp = y.shape
    return pl.pallas_call(
        _bn_act_apply_kernel,
        out_shape=jax.ShapeDtypeStruct((mp, coutp), jnp.bfloat16),
        grid=(mp // tm,),
        in_specs=[pl.BlockSpec((tm, coutp), lambda i: (i, 0)),
                  pl.BlockSpec((1, coutp), lambda i: (0, 0)),
                  pl.BlockSpec((1, coutp), lambda i: (0, 0))],
        out_specs=pl.BlockSpec((tm, coutp), lambda i: (i, 0)),
        compiler_params=pltpu.CompilerParams(
            dimension_semantics=("parallel",),
            vmem_limit_bytes=_VMEM_LIMIT),
    )(y, scale, shift)


# ----------------------------------------------------------------------------
# Gridded, lane-dense scalar reductions (sum accumulated in SMEM scratch)
# ----------------------------------------------------------------------------
def _l1_sum_kernel(a_ref, b_ref, o_ref, acc_ref):
    i = pl.program_id(0)

    @pl.when(i == 0)
    def _():
        acc_ref[0] = jnp.float32(0.0)

    acc_ref[0] += jnp.sum(jnp.abs(a_ref[...] - b_ref[...]))

    @pl.when(i == pl.num_programs(0) - 1)
    def _():
        o_ref[0, 0] = acc_ref[0]


def _sum_kernel(x_ref, o_ref, acc_ref):
    i = pl.program_id(0)

    @pl.when(i == 0)
    def _():
        acc_ref[0] = jnp.float32(0.0)

    acc_ref[0] += jnp.sum(x_ref[...])

    @pl.when(i == pl.num_programs(0) - 1)
    def _():
        o_ref[0, 0] = acc_ref[0]


def _hinge_sum_kernel(lr_ref, lf_ref, o_ref, acc_ref):
    i = pl.program_id(0)

    @pl.when(i == 0)
    def _():
        acc_ref[0] = jnp.float32(0.0)

    s = (jnp.sum(jnp.maximum(1.0 - lr_ref[...], 0.0)) +
         jnp.sum(jnp.maximum(1.0 + lf_ref[...], 0.0)))
    acc_ref[0] += s

    @pl.when(i == pl.num_programs(0) - 1)
    def _():
        o_ref[0, 0] = acc_ref[0]


def _vanilla_sum_kernel(lr_ref, lf_ref, o_ref, acc_ref):
    i = pl.program_id(0)

    @pl.when(i == 0)
    def _():
        acc_ref[0] = jnp.float32(0.0)

    s = (jnp.sum(jax.nn.softplus(-lr_ref[...])) +
         jnp.sum(jax.nn.softplus(lf_ref[...])))
    acc_ref[0] += s

    @pl.when(i == pl.num_programs(0) - 1)
    def _():
        o_ref[0, 0] = acc_ref[0]


def _tile_flat(x, pad_value):
    """Flatten to lane-dense (rows, 128) f32 tiles; pad with a neutral value."""
    x = jnp.asarray(x, jnp.float32).reshape(-1)
    n = x.shape[0]
    rows = max(1, pl.cdiv(n, _LANE))
    tm = min(_RED_ROWS, _round_up(rows, 8))
    rows_p = _round_up(rows, tm)
    x = jnp.pad(x, (0, rows_p * _LANE - n), constant_values=pad_value)
    return x.reshape(rows_p, _LANE), tm, rows_p // tm


def _scalar_reduce(kernel, arrays, pad_values):
    assert all(a.size == arrays[0].size for a in arrays)
    tiles, tm, gm = [], None, None
    for a, pv in zip(arrays, pad_values):
        t, tm, gm = _tile_flat(a, pv)
        tiles.append(t)
    out = pl.pallas_call(
        kernel,
        out_shape=jax.ShapeDtypeStruct((1, 1), jnp.float32),
        grid=(gm,),
        in_specs=[pl.BlockSpec((tm, _LANE), lambda i: (i, 0)) for _ in tiles],
        out_specs=pl.BlockSpec((1, 1), lambda i: (0, 0),
                               memory_space=pltpu.MemorySpace.SMEM),
        scratch_shapes=[pltpu.SMEM((1,), jnp.float32)],
        compiler_params=pltpu.CompilerParams(
            dimension_semantics=("arbitrary",),
            vmem_limit_bytes=_VMEM_LIMIT),
    )(*tiles)
    return out[0, 0]


def l1_mean(a, b):
    return _scalar_reduce(_l1_sum_kernel, [a, b], [0.0, 0.0]) / a.size


def neg_mean(x):
    return -_scalar_reduce(_sum_kernel, [x], [0.0]) / x.size


def hinge_d_loss(logits_real, logits_fake):
    # pads: real->+1 (relu(1-1)=0), fake->-1 (relu(1-1)=0) so padding adds 0.
    s = _scalar_reduce(_hinge_sum_kernel, [logits_real, logits_fake],
                       [1.0, -1.0])
    return 0.5 * s / logits_real.size


def vanilla_d_loss(logits_real, logits_fake):
    # pads: softplus(-100) == 0 in f32, so padding adds 0.
    s = _scalar_reduce(_vanilla_sum_kernel, [logits_real, logits_fake],
                       [100.0, -100.0])
    return 0.5 * s / logits_real.size


def adopt_weight(weight, global_step, threshold=0, value=0.0):
    # jit-safe (the torch original uses a Python `if` on global_step).
    return jnp.where(jnp.asarray(global_step) < threshold, value, weight)


# ----------------------------------------------------------------------------
# im2col (channels-last, bf16).  Flatten order (kh, kw, C) matches the weight
# layout built in PallasNLayerDiscriminator.__init__.
# ----------------------------------------------------------------------------
def _im2col_nhwc(x, kh, kw, stride, pad):
    n, h, w, c = x.shape
    xp = jnp.pad(x, ((0, 0), (pad, pad), (pad, pad), (0, 0)))
    ho = (h + 2 * pad - kh) // stride + 1
    wo = (w + 2 * pad - kw) // stride + 1
    cols = []
    for i in range(kh):
        for j in range(kw):
            cols.append(xp[:, i:i + stride * ho:stride,
                           j:j + stride * wo:stride, :])
    patches = jnp.concatenate(cols, axis=-1)          # (N, Ho, Wo, kh*kw*C)
    return patches.reshape(n * ho * wo, kh * kw * c), n, ho, wo


# ----------------------------------------------------------------------------
# PatchGAN NLayerDiscriminator with synthetic weights_init parameters
# ----------------------------------------------------------------------------
class PallasNLayerDiscriminator:
    def __init__(self, key, input_nc=3, ndf=64, n_layers=3):
        specs = [(input_nc, ndf, 2, False, True, False)]
        nf_prev = 1
        for n in range(1, n_layers):
            nf = min(2 ** n, 8)
            specs.append((ndf * nf_prev, ndf * nf, 2, True, True, False))
            nf_prev = nf
        nf = min(2 ** n_layers, 8)
        specs.append((ndf * nf_prev, ndf * nf, 1, True, True, False))
        specs.append((ndf * nf, 1, 1, False, False, True))

        cfg, params = [], []
        keys = jax.random.split(key, 2 * len(specs))
        for idx, (cin, cout, stride, use_bn, use_act, final) in enumerate(specs):
            kkey, bkey = keys[2 * idx], keys[2 * idx + 1]
            kdim = 16 * cin
            kdim_p = _round_up(kdim, _LANE)            # pads layer-0 K 48 -> 128
            coutp = _round_up(cout, _LANE) if final else cout  # Cout 1 -> 128
            # weights_init: N(0, 0.02); stored pre-flattened (kh*kw*Cin, Cout),
            # zero-padded, bf16.  (Conv layers before BatchNorm have no bias in
            # the torch module; zero bias is equivalent.)
            w = 0.02 * jax.random.normal(kkey, (4, 4, cin, cout), jnp.float32)
            w = w.reshape(kdim, cout)
            w = jnp.pad(w, ((0, kdim_p - kdim), (0, coutp - cout)))
            p = {'w': w.astype(jnp.bfloat16),
                 'b': jnp.zeros((1, coutp), jnp.float32)}
            if use_bn:
                p['gamma'] = 1.0 + 0.02 * jax.random.normal(bkey, (cout,),
                                                            jnp.float32)
                p['beta'] = jnp.zeros((cout,), jnp.float32)
            params.append(p)
            cfg.append(dict(cout=cout, stride=stride, bn=use_bn, act=use_act,
                            final=final, kp=kdim_p))
        self._cfg = tuple(cfg)
        self.params = params
        self._fwd = jax.jit(self._forward)

    def __call__(self, x_nchw):
        return self._fwd(self.params, x_nchw)

    def _forward(self, params, x_nchw):
        x = jnp.transpose(x_nchw, (0, 2, 3, 1)).astype(jnp.bfloat16)  # NHWC bf16
        for cfg, p in zip(self._cfg, params):
            patches, n, ho, wo = _im2col_nhwc(x, 4, 4, cfg['stride'], 1)
            m, kdim = patches.shape
            kp = cfg['kp']
            tm = min(_TM, _round_up(m, 16))
            mp = _round_up(m, tm)
            tk = _TK if kp % _TK == 0 else _LANE
            patches = jnp.pad(patches, ((0, mp - m), (0, kp - kdim)))
            if cfg['bn']:
                y, ssum, ssq = _conv_bn_stats(patches, p['w'], p['b'],
                                              m_true=m, tm=tm, tk=tk)
                # training-mode BatchNorm: biased variance over (N, Ho, Wo)
                mean = ssum[0] / m
                var = jnp.maximum(ssq[0] / m - mean * mean, 0.0)
                inv = jax.lax.rsqrt(var + _BN_EPS)
                scale = (p['gamma'] * inv).reshape(1, -1)
                shift = (p['beta'] - mean * p['gamma'] * inv).reshape(1, -1)
                y = _bn_act_apply(y, scale, shift, tm=tm)
            else:
                out_dtype = jnp.float32 if cfg['final'] else jnp.bfloat16
                y = _conv_act(patches, p['w'], p['b'], tm=tm, tk=tk,
                              use_act=cfg['act'], out_dtype=out_dtype)
            x = y[:m, :cfg['cout']].reshape(n, ho, wo, cfg['cout'])
        return jnp.transpose(x, (0, 3, 1, 2)).astype(jnp.float32)     # NCHW logits


# ----------------------------------------------------------------------------
# VQLPIPSWithDiscriminatorOCR (forward semantics)
# ----------------------------------------------------------------------------
class VQLPIPSWithDiscriminatorOCRPallas:
    def __init__(self, disc_start, codebook_weight=1.0, pixelloss_weight=1.0,
                 disc_num_layers=3, disc_in_channels=3, disc_factor=1.0,
                 disc_weight=1.0, perceptual_weight=0.2, ocr_perceptual_weight=1.0,
                 use_actnorm=False, disc_conditional=False, disc_ndf=64,
                 disc_loss='hinge', key=None):
        assert disc_loss in ('hinge', 'vanilla')
        # TODO(synk): only the BatchNorm discriminator is implemented (use_actnorm=False).
        assert not use_actnorm
        self.codebook_weight = codebook_weight
        self.pixel_weight = pixelloss_weight
        self.perceptual_weight = perceptual_weight
        self.ocr_perceptual_weight = ocr_perceptual_weight
        self.discriminator_iter_start = disc_start
        self.disc_factor = disc_factor
        self.discriminator_weight = disc_weight
        self.disc_conditional = disc_conditional
        self.disc_loss = hinge_d_loss if disc_loss == 'hinge' else vanilla_d_loss
        # `less4blank_loss` is referenced by the torch forward but never set in
        # __init__; we take the standard (False) path: rec_loss = |x - x_rec|.
        self.less4blank_loss = False
        self.discriminator = PallasNLayerDiscriminator(
            key if key is not None else jax.random.PRNGKey(0),
            input_nc=disc_in_channels, ndf=disc_ndf, n_layers=disc_num_layers)

    def __call__(self, codebook_loss, inputs, reconstructions, optimizer_idx,
                 global_step, last_layer=None, cond=None, split='train'):
        # local override; the torch code permanently mutates self on 'test'.
        perceptual_weight = 1.0 if split == 'test' else self.perceptual_weight

        rec_loss_mean = l1_mean(inputs, reconstructions)

        # TODO(synk): LPIPS (pretrained VGG16) has no in-script weights; contribution is 0.
        p_loss = jnp.float32(0.0)
        # TODO(synk): OCR_CRAFT_LPIPS (pretrained CRAFT) has no in-script weights; contribution is 0.
        p_ocr_loss = jnp.float32(0.0)

        total_loss = (rec_loss_mean
                      + perceptual_weight * p_loss
                      + self.ocr_perceptual_weight * p_ocr_loss)

        if optimizer_idx == 0:
            if cond is None:
                assert not self.disc_conditional
                logits_fake = self.discriminator(reconstructions)
            else:
                assert self.disc_conditional
                logits_fake = self.discriminator(
                    jnp.concatenate([reconstructions, cond], axis=1))
            g_loss = neg_mean(logits_fake)

            # TODO(synk): calculate_adaptive_weight needs autograd through the external
            # generator `last_layer`; mirror the torch eval-mode fallback (0.0).
            d_weight = jnp.float32(0.0)

            disc_factor = adopt_weight(self.disc_factor, global_step,
                                       threshold=self.discriminator_iter_start)
            quant_loss = self.codebook_weight * jnp.mean(codebook_loss)
            loss = total_loss + d_weight * disc_factor * g_loss + quant_loss
            log = {
                f'{split}/total_loss': loss,
                f'{split}/quant_loss': quant_loss,
                f'{split}/rec_loss': rec_loss_mean,
                f'{split}/ocr_loss': self.ocr_perceptual_weight * p_ocr_loss,
                f'{split}/p_loss': perceptual_weight * p_loss,
                f'{split}/g_loss': disc_factor * d_weight * g_loss,
            }
            return loss, log

        if optimizer_idx == 1:
            x_real = jax.lax.stop_gradient(inputs)
            x_fake = jax.lax.stop_gradient(reconstructions)
            if cond is not None:
                x_real = jnp.concatenate([x_real, cond], axis=1)
                x_fake = jnp.concatenate([x_fake, cond], axis=1)
            # single batched discriminator pass over [real; fake]
            logits = self.discriminator(jnp.concatenate([x_real, x_fake], axis=0))
            nb = x_real.shape[0]
            logits_real, logits_fake = logits[:nb], logits[nb:]
            disc_factor = adopt_weight(self.disc_factor, global_step,
                                       threshold=self.discriminator_iter_start)
            d_loss = disc_factor * self.disc_loss(logits_real, logits_fake)
            log = {f'{split}/disc_loss': disc_factor * d_loss}
            return d_loss, log

        raise ValueError(f'unknown optimizer_idx {optimizer_idx}')


# ----------------------------------------------------------------------------
if __name__ == "__main__":
    key = jax.random.PRNGKey(0)
    k_in, k_rec, k_cb, k_disc = jax.random.split(key, 4)

    # batch=2, disc_in_channels=3, spatial=32 (min size surviving the 3-layer
    # PatchGAN with its two trailing 4x4 stride-1 convs).
    inputs = jax.random.normal(k_in, (2, 3, 32, 32), jnp.float32)
    reconstructions = jax.random.normal(k_rec, (2, 3, 32, 32), jnp.float32)
    codebook_loss = jnp.abs(jax.random.normal(k_cb, (), jnp.float32))

    loss_mod = VQLPIPSWithDiscriminatorOCRPallas(disc_start=0, key=k_disc)

    # generator branch
    loss0, log0 = loss_mod(codebook_loss, inputs, reconstructions,
                           optimizer_idx=0, global_step=10)
    # discriminator branch (real+fake batched through one discriminator pass)
    loss1, log1 = loss_mod(codebook_loss, inputs, reconstructions,
                           optimizer_idx=1, global_step=10)
    jax.block_until_ready((loss0, loss1, log0, log1))

    # sanity: Pallas L1 reduction matches XLA
    ref_l1 = jnp.mean(jnp.abs(inputs - reconstructions))
    assert jnp.allclose(log0['train/rec_loss'], ref_l1, atol=1e-4, rtol=1e-4)
    assert jnp.isfinite(loss0) and jnp.isfinite(loss1)
    print("KERNEL_OK")
</pallas_src>

<mosaic_0001>
module attributes {stable_mosaic.version = 11 : i64} {
  func.func @_l1_sum_kernel(%arg0: i32, %arg1: memref<48x128xf32, #tpu.memory_space<vmem>>, %arg2: memref<48x128xf32, #tpu.memory_space<vmem>>, %arg3: memref<1x1xf32, #tpu.memory_space<smem>>, %arg4: memref<1xf32, #tpu.memory_space<smem>>) attributes {dimension_semantics = [#tpu.dimension_semantics<arbitrary>], iteration_bounds = array<i64: 1>, scalar_prefetch = 0 : i64, scratch_operands = 1 : i64, tpu.core_type = #tpu.core_type<tc>, window_params = [{transform_indices = @transform_0, window_bounds = array<i64: 48, 128>}, {transform_indices = @transform_1, window_bounds = array<i64: 48, 128>}, {transform_indices = @transform_2, window_bounds = array<i64: 1, 1>}]} {
    %c0_i32 = arith.constant 0 : i32
    %0 = arith.cmpi eq, %arg0, %c0_i32 : i32
    %1 = arith.extui %0 : i1 to i32
    %c0_i32_0 = arith.constant 0 : i32
    %2 = arith.cmpi ne, %1, %c0_i32_0 : i32
    scf.if %2 {
      %cst_8 = arith.constant 0.000000e+00 : f32
      %c0_9 = arith.constant 0 : index
      %17 = memref.load %arg4[%c0_9] : memref<1xf32, #tpu.memory_space<smem>>
      memref.store %cst_8, %arg4[%c0_9] : memref<1xf32, #tpu.memory_space<smem>>
    } else {
    }
    %c0 = arith.constant 0 : index
    %3 = memref.load %arg4[%c0] : memref<1xf32, #tpu.memory_space<smem>>
    %c0_1 = arith.constant 0 : index
    %c0_2 = arith.constant 0 : index
    %4 = vector.load %arg1[%c0_1, %c0_2] : memref<48x128xf32, #tpu.memory_space<vmem>>, vector<48x128xf32>
    %c0_3 = arith.constant 0 : index
    %c0_4 = arith.constant 0 : index
    %5 = vector.load %arg2[%c0_3, %c0_4] : memref<48x128xf32, #tpu.memory_space<vmem>>, vector<48x128xf32>
    %6 = arith.subf %4, %5 : vector<48x128xf32>
    %7 = math.absf %6 : vector<48x128xf32>
    %8 = vector.shape_cast %7 : vector<48x128xf32> to vector<1x48x128xf32>
    %cst = arith.constant dense<0.000000e+00> : vector<1xf32>
    %9 = vector.multi_reduction <add>, %8, %cst [1, 2] : vector<1x48x128xf32> to vector<1xf32>
    %10 = vector.shape_cast %9 : vector<1xf32> to vector<1x1x1xf32>
    %11 = vector.extract %10[0, 0, 0] : f32 from vector<1x1x1xf32>
    %12 = arith.addf %3, %11 : f32
    %c0_5 = arith.constant 0 : index
    %13 = memref.load %arg4[%c0_5] : memref<1xf32, #tpu.memory_space<smem>>
    memref.store %12, %arg4[%c0_5] : memref<1xf32, #tpu.memory_space<smem>>
    %c0_i32_6 = arith.constant 0 : i32
    %14 = arith.cmpi eq, %arg0, %c0_i32_6 : i32
    %15 = arith.extui %14 : i1 to i32
    %c0_i32_7 = arith.constant 0 : i32
    %16 = arith.cmpi ne, %15, %c0_i32_7 : i32
    scf.if %16 {
      %c0_8 = arith.constant 0 : index
      %17 = memref.load %arg4[%c0_8] : memref<1xf32, #tpu.memory_space<smem>>
      %c0_9 = arith.constant 0 : index
      %c0_10 = arith.constant 0 : index
      %18 = memref.load %arg3[%c0_9, %c0_10] : memref<1x1xf32, #tpu.memory_space<smem>>
      memref.store %17, %arg3[%c0_9, %c0_10] : memref<1x1xf32, #tpu.memory_space<smem>>
    } else {
    }
    return
  }
  func.func @transform_0(%arg0: i32) -> (i32, i32) {
    %c0_i32 = arith.constant 0 : i32
    %c0_i32_0 = arith.constant 0 : i32
    return %arg0, %c0_i32 : i32, i32
  }
  func.func @transform_1(%arg0: i32) -> (i32, i32) {
    %c0_i32 = arith.constant 0 : i32
    %c0_i32_0 = arith.constant 0 : i32
    return %arg0, %c0_i32 : i32, i32
  }
  func.func @transform_2(%arg0: i32) -> (i32, i32) {
    %c0_i32 = arith.constant 0 : i32
    %c0_i32_0 = arith.constant 0 : i32
    %c0_i32_1 = arith.constant 0 : i32
    return %c0_i32, %c0_i32_0 : i32, i32
  }
}

</mosaic_0001>

<llo_original>
// kernel: tpu_custom_call.1
$region0: #{tpu_custom_call.1}
  #allocation0 [shape = 'u32[]', space=smem, size = 0x4, offset = 0x4, fixed_abs, tag = 'smem constant byte address 0x4 - core index']
  #allocation1 [shape = 'u32[144,128]{1,0:T(1,128)}', space=vmem, size = 0x12000, scoped, tag = 'internal scratch']
  #allocation2 [shape = 'f32[1]{0:T(128)}', space=smem, size = 0x200, scoped, tag = 'scratch operand']
  %s0 = inlined_call_operand.hbm [shape: f32[48,128], index: 0, kind: input, shape index: {}]
  %s1 = inlined_call_operand.hbm [shape: f32[48,128], index: 1, kind: input, shape index: {}]
  %s2 = inlined_call_operand.hbm [shape: f32[1,1], index: 2, kind: output, shape index: {}]
  %s3 = sld [smem:[#allocation0]]
  $region34: #{tpu_custom_call.1} parent=0
    _
  %s5 = ssub.s32 1, %s3
  %s6 = scalar_select 0, %s5, %s3
  $region1: #{tpu_custom_call.1} parent=0
    #allocation3 [shape = 'u8[24576]{0}', space=vmem, size = 0x6000, scoped, tag = 'input window, operand 0, single buffered']
    #allocation4 [shape = 's32[1]{0}', space=sflag, size = 0x4, scoped, tag = 'scoped memory for tpu_custom_call.1']
    #allocation5 [shape = 's32[1]{0}', space=sflag, size = 0x4, scoped, tag = 'scoped memory for tpu_custom_call.1']
    #allocation6 [shape = 'u8[24576]{0}', space=vmem, size = 0x6000, scoped, tag = 'input window, operand 1, single buffered']
    #allocation7 [shape = 's32[1]{0}', space=sflag, size = 0x4, scoped, tag = 'scoped memory for tpu_custom_call.1']
    #allocation8 [shape = 'u8[512]{0}', space=smem, size = 0x200, scoped, tag = 'output window, operand 0, single buffered']
    %7 = vsyncpa [#allocation4], 0
    %8 = vsyncpa [#allocation7], 0
    %9 = vsyncpa [#allocation5], 0
    // Predicated region
    $region2: #{tpu_custom_call.1} parent=1 // pred_check
      _
    $region3: #{tpu_custom_call.1} parent=1 // pred_check_branch
      %11 = sbr.rel (0) target = $region5
    $region4: #{tpu_custom_call.1} parent=1 // pred_region
      %s13 = ssub.s32 768, 768
      %14 = vsyncadd [#allocation4], %s13
      %s15 = sshll.u32 [#allocation3], 4
      %s16 = int_to_ptr.vmem [resolvable:$true] %s15
      %21 = dma.hbm_to_vmem [thread:$0]  %s0, 768, %s16, [#allocation4], 128, 128, 8
    $region5: #{tpu_custom_call.1} parent=1 // pred_fallthru
      _
    // Predicated region
    $region6: #{tpu_custom_call.1} parent=1 // pred_check
      _
    $region7: #{tpu_custom_call.1} parent=1 // pred_check_branch
      %23 = sbr.rel (0) target = $region9
    $region8: #{tpu_custom_call.1} parent=1 // pred_region
      %s25 = ssub.s32 768, 768
      %26 = vsyncadd [#allocation7], %s25
      %s27 = sshll.u32 [#allocation6], 4
      %s28 = int_to_ptr.vmem [resolvable:$true] %s27
      %33 = dma.hbm_to_vmem [thread:$0]  %s1, 768, %s28, [#allocation7], 128, 128, 8
    $region9: #{tpu_custom_call.1} parent=1 // pred_fallthru
      _
    // Predicated region
    $region10: #{tpu_custom_call.1} parent=1 // pred_check
      _
    $region11: #{tpu_custom_call.1} parent=1 // pred_check_branch
      %35 = sbr.rel (0) target = $region13
    $region12: #{tpu_custom_call.1} parent=1 // pred_region
      %36 = dma.done [#allocation4], 768
    $region13: #{tpu_custom_call.1} parent=1 // pred_fallthru
      _
    // Predicated region
    $region14: #{tpu_custom_call.1} parent=1 // pred_check
      _
    $region15: #{tpu_custom_call.1} parent=1 // pred_check_branch
      %38 = sbr.rel (0) target = $region17
    $region16: #{tpu_custom_call.1} parent=1 // pred_region
      %39 = dma.done [#allocation7], 768
    $region17: #{tpu_custom_call.1} parent=1 // pred_fallthru
      _
    %p40 = scmp.eq.s32.totalorder 0, 0
    // Predicated region
    $region18: #{tpu_custom_call.1} parent=1 // pred_check
      %p41 = pneg %p40
    $region19: #{tpu_custom_call.1} parent=1 // pred_check_branch
      %43 = sbr.rel (%p41) target = $region21
    $region20: #{tpu_custom_call.1} parent=1 // pred_region
      %s44 = scalar_lea.smem [#allocation2], 0
      %45 = sst [smem:[%s44]] 0.0
    $region21: #{tpu_custom_call.1} parent=1 // pred_fallthru
      _
    %s46 = sld [smem:[#allocation2]]
    %v47 = vld [vmem:[#allocation3] sm:$0xff]
    %v48 = vld [vmem:[#allocation3 + $0x8] sm:$0xff]
    %v49 = vld [vmem:[#allocation3 + $0x10] sm:$0xff]
    %v50 = vld [vmem:[#allocation3 + $0x18] sm:$0xff]
    %v51 = vld [vmem:[#allocation3 + $0x20] sm:$0xff]
    %v52 = vld [vmem:[#allocation3 + $0x28] sm:$0xff]
    %v53 = vld [vmem:[#allocation6] sm:$0xff]
    %v54 = vld [vmem:[#allocation6 + $0x8] sm:$0xff]
    %v55 = vld [vmem:[#allocation6 + $0x10] sm:$0xff]
    %v56 = vld [vmem:[#allocation6 + $0x18] sm:$0xff]
    %v57 = vld [vmem:[#allocation6 + $0x20] sm:$0xff]
    %v58 = vld [vmem:[#allocation6 + $0x28] sm:$0xff]
    %v59 = vsub.f32 %v47, %v53
    %v60 = vsub.f32 %v48, %v54
    %v61 = vsub.f32 %v49, %v55
    %v62 = vsub.f32 %v50, %v56
    %v63 = vsub.f32 %v51, %v57
    %v64 = vsub.f32 %v52, %v58
    %v65 = vand.u32 2147483647, %v59
    %v66 = vand.u32 2147483647, %v60
    %v67 = vand.u32 2147483647, %v61
    %v68 = vand.u32 2147483647, %v62
    %v69 = vand.u32 2147483647, %v63
    %v70 = vand.u32 2147483647, %v64
    %v71 = vadd.f32 %v65, %v66
    %v72 = vadd.f32 %v71, %v67
    %v73 = vadd.f32 %v72, %v68
    %v74 = vadd.f32 %v73, %v69
    %v75 = vadd.f32 %v74, %v70
    %76 = vadd.xlane.f32.xlu0 %v75
    %v77 = vpop.xlane.xlu0 %76
    %v78 = vrot.slane %v77, 4
    %v79 = vadd.f32 %v77, %v78
    %v80 = vrot.slane %v79, 2
    %v81 = vadd.f32 %v79, %v80
    %v82 = vrot.slane %v81, 1
    %v83 = vadd.f32 %v81, %v82
    %s84 = vtos %v83
    %s85 = sadd.f32 %s46, %s84
    %s86 = scalar_lea.smem [#allocation2], 0
    %87 = sst [smem:[%s86]] %s85
    // Predicated region
    $region22: #{tpu_custom_call.1} parent=1 // pred_check
      %p88 = pneg %p40
    $region23: #{tpu_custom_call.1} parent=1 // pred_check_branch
      %90 = sbr.rel (%p88) target = $region25
    $region24: #{tpu_custom_call.1} parent=1 // pred_region
      %s91 = sld [smem:[#allocation2]]
      %s92 = scalar_lea.smem [#allocation8], 0
      %93 = sst [smem:[%s92]] %s91
    $region25: #{tpu_custom_call.1} parent=1 // pred_fallthru
      _
    // Predicated region
    $region26: #{tpu_custom_call.1} parent=1 // pred_check
      _
    $region27: #{tpu_custom_call.1} parent=1 // pred_check_branch
      %95 = sbr.rel (0) target = $region29
    $region28: #{tpu_custom_call.1} parent=1 // pred_region
      %s97 = ssub.s32 16, 16
      %98 = vsyncadd [#allocation5], %s97
      %101 = dma.smem_to_hbm [#allocation8], 16, %s2, [#allocation5]
    $region29: #{tpu_custom_call.1} parent=1 // pred_fallthru
      _
    // Predicated region
    $region30: #{tpu_custom_call.1} parent=1 // pred_check
      _
    $region31: #{tpu_custom_call.1} parent=1 // pred_check_branch
      %103 = sbr.rel (0) target = $region33
    $region32: #{tpu_custom_call.1} parent=1 // pred_region
      %104 = dma.done [#allocation5], 16
    $region33: #{tpu_custom_call.1} parent=1 // pred_fallthru
      _
    %105 = sfence
    %106 = vsyncpa [#allocation4], 1
    %107 = vsyncpa [#allocation7], 1
    %108 = vsyncpa [#allocation5], 1

</llo_original>
